<compile_context>
chip_gen: v5e
topology: v5e:2x2
jax: 0.10.0
libtpu: 0.0.40
codegen_flags: <defaults>
</compile_context>

<pallas_src>
import functools

import jax
import jax.numpy as jnp
import numpy as np
from jax.experimental import pallas as pl
from jax.experimental.pallas import tpu as pltpu


def _convT_bn_silu_kernel(x_ref, gid_ref, w_ref, shift_ref, o_ref, *, c2):
    # x_ref:     (1, C1, TQ)   pre-upsampled input tile, lane-dense
    # gid_ref:   (1, TQ)       int32 per-lane tap id  g = di*2 + dj
    # w_ref:     (4*C2, C1)    conv-transpose taps, BN scale folded in, rows (di,dj,co)
    # shift_ref: (C2, 1)       folded BatchNorm shift
    # o_ref:     (1, C2, TQ)   NCHW-flat output tile, lane-dense
    x = x_ref[0]                                                  # (C1, TQ)
    # Tiny-K matmul on the MXU; kernel is HBM-bound so the 4x redundant taps are free.
    acc = jnp.dot(w_ref[...], x, preferred_element_type=jnp.float32)   # (4*C2, TQ)
    g = gid_ref[...]                                              # (1, TQ)
    y = jnp.where(g < 2,
                  jnp.where(g == 0, acc[0:c2], acc[c2:2 * c2]),
                  jnp.where(g == 2, acc[2 * c2:3 * c2], acc[3 * c2:4 * c2]))
    y = y + shift_ref[...]                                        # BatchNorm (inference)
    # SiLU = y * sigmoid(y) = 0.5 * y * (1 + tanh(y/2))  -- single EUP op, exact.
    o_ref[0] = (0.5 * y * (1.0 + jnp.tanh(0.5 * y))).astype(o_ref.dtype)


def _round_up(v, m):
    return ((v + m - 1) // m) * m


def _hw_info():
    """(physical VMEM bytes, TensorCores per chip) with safe fallbacks."""
    vmem_phys = 64 * 1024 * 1024
    try:
        vmem_phys = int(pltpu.get_tpu_info().vmem_capacity_bytes)
    except Exception:
        pass
    n_cores = 1
    try:
        kind = str(jax.devices()[0].device_kind).lower()
        # v4 / v5p / v7x have 2 TensorCores per chip (megacore); v5e / v6e have 1.
        if ("v4" in kind) or ("7" in kind) or ("v5p" in kind) or kind.strip().endswith("v5"):
            n_cores = 2
    except Exception:
        pass
    return vmem_phys, n_cores


def _pick_lane_tile(qp, n_batch, c1, c2, vmem_phys, n_cores):
    """Largest 128-multiple lane tile dividing qp that fits the VMEM budget."""
    c1p = max(8, _round_up(c1, 8))
    c2p = max(8, _round_up(c2, 8))
    # double-buffered x / out blocks + single-buffered f32 intermediates + gid block
    bytes_per_lane = 4 * (2 * (c1p + c2p) + 4 * c2 + 2 * c2) + 2 * 4
    budget = vmem_phys // 2                       # 64 MiB on v5e/v6e, 32 MiB on v7x
    cap = min(16384, budget // bytes_per_lane)
    cap = max(128, (cap // 128) * 128)

    m = qp // 128                                 # qp is a multiple of 128
    best = 1
    d = 1
    while d * d <= m:
        if m % d == 0:
            for c in (d, m // d):
                if c * 128 <= cap:
                    best = max(best, c)
        d += 1
    tq = best * 128

    # Only split for megacore sharding on chips that actually have 2 TensorCores.
    min_grid = 2 * n_cores if n_cores > 1 else 1
    while n_batch * (qp // tq) < min_grid and tq % 256 == 0 and tq >= 256:
        tq //= 2
    return tq


def conv_transpose_bn_silu(x, w, gamma, beta, running_mean, running_var,
                           eps=1e-5, k=2, s=2):
    """x: (N, C1, H, W) NCHW; w: (C1, C2, k, k) (PyTorch ConvTranspose2d weight)."""
    assert s == k and k == 2, "kernel specialized to the module defaults k=2, s=2, p=0"
    N, C1, H, W = x.shape
    wc1, C2, kH, kW = w.shape
    assert wc1 == C1 and (kH, kW) == (k, k)
    Q = 4 * H * W                                  # flattened (2H, 2W) output axis
    Qp = _round_up(Q, 128)                         # guarantee lane-dense 128-multiple tiles

    # Fold BatchNorm (inference): scale into the weight rows, shift as a bias.
    scale_c = gamma / jnp.sqrt(running_var + eps)                         # (C2,)
    shift_c = beta - running_mean * scale_c                               # (C2,)
    w_all = (jnp.transpose(w, (2, 3, 1, 0)) * scale_c[None, None, :, None])
    w_all = w_all.reshape(4 * C2, C1).astype(jnp.float32)                 # rows (di, dj, co)
    shift = shift_c.reshape(C2, 1).astype(jnp.float32)

    # Nearest-neighbour 2x2 pre-upsample of x (XLA broadcast over the SMALL input):
    # its flattened spatial axis is exactly the output's flattened (2H, 2W) axis.
    x_up = jnp.broadcast_to(x[:, :, :, None, :, None],
                            (N, C1, H, 2, W, 2)).reshape(N, C1, Q)
    if Qp != Q:
        x_up = jnp.pad(x_up, ((0, 0), (0, 0), (0, Qp - Q)))

    # Per-output-lane tap id  g = di*2 + dj  (which of the k*k weight taps applies).
    qi = jnp.arange(Qp, dtype=jnp.int32)
    gid = (((qi // (2 * W)) % 2) * 2 + (qi % 2)).reshape(1, Qp).astype(jnp.int32)

    vmem_phys, n_cores = _hw_info()
    tq = _pick_lane_tile(Qp, N, C1, C2, vmem_phys, n_cores)
    assert Qp % tq == 0 and tq % 128 == 0
    grid = (N, Qp // tq)

    cost = pl.CostEstimate(
        flops=2 * N * Qp * C1 * 4 * C2,
        transcendentals=N * Qp * C2,
        bytes_accessed=4 * (N * C1 * Qp + N * C2 * Qp + N * Qp + 4 * C2 * C1 + C2),
    )

    kernel = functools.partial(_convT_bn_silu_kernel, c2=C2)
    out_flat = pl.pallas_call(
        kernel,
        out_shape=jax.ShapeDtypeStruct((N, C2, Qp), x.dtype),
        grid_spec=pltpu.PrefetchScalarGridSpec(
            num_scalar_prefetch=0,
            grid=grid,
            in_specs=[
                pl.BlockSpec((1, C1, tq), lambda n, t: (n, 0, t)),     # x (lane-dense)
                pl.BlockSpec((1, tq), lambda n, t: (0, t)),            # tap ids
                pl.BlockSpec((4 * C2, C1), lambda n, t: (0, 0)),       # weights (resident)
                pl.BlockSpec((C2, 1), lambda n, t: (0, 0)),            # BN shift
            ],
            out_specs=pl.BlockSpec((1, C2, tq), lambda n, t: (n, 0, t)),
        ),
        compiler_params=pltpu.CompilerParams(
            dimension_semantics=("parallel", "parallel"),
            vmem_limit_bytes=int(vmem_phys * 3 // 4),
        ),
        cost_estimate=cost,
    )(x_up, gid, w_all, shift)

    # Free reshape: the flat axis is already (2H, 2W) in NCHW order.
    return out_flat[:, :, :Q].reshape(N, C2, 2 * H, 2 * W)


if __name__ == "__main__":
    key = jax.random.PRNGKey(0)
    kx, kw, kg, kb, km, kv = jax.random.split(key, 6)

    N, C1, H, W = 2, 4, 16, 16
    C2, k, s = 8, 2, 2

    x = jax.random.normal(kx, (N, C1, H, W), dtype=jnp.float32)
    # ConvTranspose2d weight shape: (c1, c2, k, k); bias absent because bn=True.
    w = jax.random.normal(kw, (C1, C2, k, k), dtype=jnp.float32) * 0.1
    # BatchNorm2d params / running stats (inference-mode BN).
    gamma = jax.random.normal(kg, (C2,), dtype=jnp.float32) * 0.1 + 1.0
    beta = jax.random.normal(kb, (C2,), dtype=jnp.float32) * 0.1
    running_mean = jax.random.normal(km, (C2,), dtype=jnp.float32) * 0.1
    running_var = jax.random.uniform(kv, (C2,), dtype=jnp.float32, minval=0.5, maxval=1.5)
    eps = 1e-5

    fn = jax.jit(lambda *a: conv_transpose_bn_silu(*a, eps=eps, k=k, s=s))
    out = fn(x, w, gamma, beta, running_mean, running_var)
    out = jax.block_until_ready(out)

    # Pure-JAX reference (direct transposed-conv definition for s=k, p=0).
    t = jnp.einsum('ncij,copq->noipjq', x, w)                 # (N, C2, H, k, W, k)
    ref = t.reshape(N, C2, H * k, W * k)
    sc = gamma / jnp.sqrt(running_var + eps)
    sh = beta - running_mean * sc
    ref = ref * sc[None, :, None, None] + sh[None, :, None, None]
    ref = ref * jax.nn.sigmoid(ref)

    np.testing.assert_allclose(np.asarray(out), np.asarray(ref), rtol=2e-3, atol=2e-3)
    assert out.shape == (N, C2, H * s, W * s)
    print("KERNEL_OK")
</pallas_src>

<mosaic_0001>
module attributes {stable_mosaic.version = 11 : i64} {
  func.func @_convT_bn_silu_kernel(%arg0: i32, %arg1: i32, %arg2: memref<1x4x1024xf32, #tpu.memory_space<vmem>>, %arg3: memref<1x1024xi32, #tpu.memory_space<vmem>>, %arg4: memref<32x4xf32, #tpu.memory_space<vmem>>, %arg5: memref<8x1xf32, #tpu.memory_space<vmem>>, %arg6: memref<1x8x1024xf32, #tpu.memory_space<vmem>>) attributes {dimension_semantics = [#tpu.dimension_semantics<parallel>, #tpu.dimension_semantics<parallel>], iteration_bounds = array<i64: 2, 1>, scalar_prefetch = 0 : i64, scratch_operands = 0 : i64, tpu.core_type = #tpu.core_type<tc>, window_params = [{transform_indices = @transform_0, window_bounds = array<i64: 1, 4, 1024>}, {transform_indices = @transform_1, window_bounds = array<i64: 1, 1024>}, {pipeline_mode = #tpu.pipeline_mode<synchronous>, transform_indices = @transform_2, window_bounds = array<i64: 32, 4>}, {pipeline_mode = #tpu.pipeline_mode<synchronous>, transform_indices = @transform_3, window_bounds = array<i64: 8, 1>}, {transform_indices = @transform_4, window_bounds = array<i64: 1, 8, 1024>}]} {
    %c0 = arith.constant 0 : index
    %c0_0 = arith.constant 0 : index
    %c0_1 = arith.constant 0 : index
    %0 = vector.load %arg2[%c0, %c0_0, %c0_1] : memref<1x4x1024xf32, #tpu.memory_space<vmem>>, vector<1x4x1024xf32>
    %1 = vector.shape_cast %0 : vector<1x4x1024xf32> to vector<4x1024xf32>
    %c0_2 = arith.constant 0 : index
    %c0_3 = arith.constant 0 : index
    %2 = vector.load %arg4[%c0_2, %c0_3] : memref<32x4xf32, #tpu.memory_space<vmem>>, vector<32x4xf32>
    %cst = arith.constant dense<0.000000e+00> : vector<32x1024xf32>
    %3 = tpu.matmul %2, %1, %cst {dimension_numbers = #tpu.dot_dimension_numbers<[1], [0], [0], [1], [0, 0, 1, 1], [], []>} : vector<32x4xf32>, vector<4x1024xf32>, vector<32x1024xf32> -> vector<32x1024xf32>
    %c0_4 = arith.constant 0 : index
    %c0_5 = arith.constant 0 : index
    %4 = vector.load %arg3[%c0_4, %c0_5] : memref<1x1024xi32, #tpu.memory_space<vmem>>, vector<1x1024xi32>
    %c2_i32 = arith.constant 2 : i32
    %5 = vector.broadcast %c2_i32 : i32 to vector<1x1024xi32>
    %6 = arith.cmpi slt, %4, %5 : vector<1x1024xi32>
    %c0_i32 = arith.constant 0 : i32
    %7 = vector.broadcast %c0_i32 : i32 to vector<1x1024xi32>
    %8 = arith.cmpi eq, %4, %7 : vector<1x1024xi32>
    %9 = vector.extract_strided_slice %3 {offsets = [0, 0], sizes = [8, 1024], strides = [1, 1]} : vector<32x1024xf32> to vector<8x1024xf32>
    %10 = vector.extract_strided_slice %3 {offsets = [8, 0], sizes = [8, 1024], strides = [1, 1]} : vector<32x1024xf32> to vector<8x1024xf32>
    %11 = vector.shape_cast %8 : vector<1x1024xi1> to vector<1x1024xi1>
    %12 = vector.broadcast %11 : vector<1x1024xi1> to vector<8x1024xi1>
    %13 = arith.select %12, %9, %10 : vector<8x1024xi1>, vector<8x1024xf32>
    %c2_i32_6 = arith.constant 2 : i32
    %14 = vector.broadcast %c2_i32_6 : i32 to vector<1x1024xi32>
    %15 = arith.cmpi eq, %4, %14 : vector<1x1024xi32>
    %16 = vector.extract_strided_slice %3 {offsets = [16, 0], sizes = [8, 1024], strides = [1, 1]} : vector<32x1024xf32> to vector<8x1024xf32>
    %17 = vector.extract_strided_slice %3 {offsets = [24, 0], sizes = [8, 1024], strides = [1, 1]} : vector<32x1024xf32> to vector<8x1024xf32>
    %18 = vector.shape_cast %15 : vector<1x1024xi1> to vector<1x1024xi1>
    %19 = vector.broadcast %18 : vector<1x1024xi1> to vector<8x1024xi1>
    %20 = arith.select %19, %16, %17 : vector<8x1024xi1>, vector<8x1024xf32>
    %21 = vector.shape_cast %6 : vector<1x1024xi1> to vector<1x1024xi1>
    %22 = vector.broadcast %21 : vector<1x1024xi1> to vector<8x1024xi1>
    %23 = arith.select %22, %13, %20 : vector<8x1024xi1>, vector<8x1024xf32>
    %c0_7 = arith.constant 0 : index
    %c0_8 = arith.constant 0 : index
    %24 = vector.load %arg5[%c0_7, %c0_8] : memref<8x1xf32, #tpu.memory_space<vmem>>, vector<8x1xf32>
    %25 = vector.broadcast %24 : vector<8x1xf32> to vector<8x1024xf32>
    %26 = arith.addf %23, %25 : vector<8x1024xf32>
    %cst_9 = arith.constant 5.000000e-01 : f32
    %27 = vector.broadcast %cst_9 : f32 to vector<8x1024xf32>
    %28 = arith.mulf %27, %26 : vector<8x1024xf32>
    %cst_10 = arith.constant 5.000000e-01 : f32
    %29 = vector.broadcast %cst_10 : f32 to vector<8x1024xf32>
    %30 = arith.mulf %29, %26 : vector<8x1024xf32>
    %31 = math.tanh %30 : vector<8x1024xf32>
    %cst_11 = arith.constant 1.000000e+00 : f32
    %32 = vector.broadcast %cst_11 : f32 to vector<8x1024xf32>
    %33 = arith.addf %32, %31 : vector<8x1024xf32>
    %34 = arith.mulf %28, %33 : vector<8x1024xf32>
    %c0_12 = arith.constant 0 : index
    %c0_13 = arith.constant 0 : index
    %c0_14 = arith.constant 0 : index
    %35 = vector.load %arg6[%c0_12, %c0_13, %c0_14] : memref<1x8x1024xf32, #tpu.memory_space<vmem>>, vector<1x8x1024xf32>
    %36 = vector.shape_cast %35 : vector<1x8x1024xf32> to vector<8x1024xf32>
    %37 = vector.shape_cast %34 : vector<8x1024xf32> to vector<1x8x1024xf32>
    tpu.vector_store %arg6[%c0_12, %c0_13, %c0_14], %37 {strides = array<i32>} : memref<1x8x1024xf32, #tpu.memory_space<vmem>>, vector<1x8x1024xf32>,
    return
  }
  func.func @transform_0(%arg0: i32, %arg1: i32) -> (i32, i32, i32) {
    %c0_i32 = arith.constant 0 : i32
    %c0_i32_0 = arith.constant 0 : i32
    return %arg0, %c0_i32, %arg1 : i32, i32, i32
  }
  func.func @transform_1(%arg0: i32, %arg1: i32) -> (i32, i32) {
    %c0_i32 = arith.constant 0 : i32
    %c0_i32_0 = arith.constant 0 : i32
    return %c0_i32, %arg1 : i32, i32
  }
  func.func @transform_2(%arg0: i32, %arg1: i32) -> (i32, i32) {
    %c0_i32 = arith.constant 0 : i32
    %c0_i32_0 = arith.constant 0 : i32
    %c0_i32_1 = arith.constant 0 : i32
    return %c0_i32, %c0_i32_0 : i32, i32
  }
  func.func @transform_3(%arg0: i32, %arg1: i32) -> (i32, i32) {
    %c0_i32 = arith.constant 0 : i32
    %c0_i32_0 = arith.constant 0 : i32
    %c0_i32_1 = arith.constant 0 : i32
    return %c0_i32, %c0_i32_0 : i32, i32
  }
  func.func @transform_4(%arg0: i32, %arg1: i32) -> (i32, i32, i32) {
    %c0_i32 = arith.constant 0 : i32
    %c0_i32_0 = arith.constant 0 : i32
    return %arg0, %c0_i32, %arg1 : i32, i32, i32
  }
}

</mosaic_0001>

<llo_original>
// kernel: _lambda_.1
$region0: #{_lambda_.1}
  #allocation0 [shape = 'u32[]', space=smem, size = 0x4, offset = 0x4, fixed_abs, tag = 'smem constant byte address 0x4 - core index']
  #allocation1 [shape = 'u32[72,128]{1,0:T(1,128)}', space=vmem, size = 0x9000, scoped, tag = 'internal scratch']
  %s0 = inlined_call_operand.vmem [shape: f32[2,4,1024], index: 0, kind: input, shape index: {}]
  %s1 = inlined_call_operand.vmem [shape: s32[1,1024], index: 1, kind: input, shape index: {}]
  %s2 = inlined_call_operand.vmem [shape: f32[32,4], index: 2, kind: input, shape index: {}]
  %s3 = inlined_call_operand.vmem [shape: f32[8,1], index: 3, kind: input, shape index: {}]
  %s4 = inlined_call_operand.vmem [shape: f32[2,8,1024], index: 4, kind: output, shape index: {}]
  %s5 = sld [smem:[#allocation0]]
  $region49: #{_lambda_.1} parent=0
    _
  %s7 = ssub.s32 1, %s5
  %s8 = scalar_select 0, %s7, %s5
  loop: start=0, step=1, limit=4
  $region2: #{_lambda_.1} parent=0 // loop_pre_header
    _
  $region3: #{_lambda_.1} parent=0 // loop_header
    %s10 = sphi 0, %s14
    %p11 = scmp.ge.s32.totalorder %s10, 4
    %s17 = sphi 0, %s29
    %s18 = sphi 0, %s25
    %s19 = sphi 0, %s17
    %s20 = sphi 0, %s18
    %s21 = sphi 0, %s19
    %s22 = sphi 0, %s20
    %s34 = sphi 0, %s36
    %s37 = sphi 0, %s34
    %s38 = sphi 0, %s37
    %s54 = sphi 0, %s38
    %s60 = sphi 0, %s62
    %s63 = sphi 0, %s60
    %s64 = sphi 0, %s63
    %s80 = sphi 0, %s64
    %s84 = sphi 0, %s84
    %s86 = sphi 0, %s84
    %s87 = sphi 0, %s86
    %s101 = sphi 0, %s87
    %s105 = sphi 0, %s105
    %s107 = sphi 0, %s105
    %s108 = sphi 0, %s107
    %s122 = sphi 0, %s108
    %s130 = sphi 0, %s132
    %s133 = sphi 0, %s130
    %s134 = sphi 0, %s133
    %s150 = sphi 0, %s134
  $region4: #{_lambda_.1} parent=0 // loop_header_branch
    %13 = sbr.rel (%p11) target = $region8
  $region5: #{_lambda_.1} parent=0 // loop_body
    %s15 = ssub.s32 %s10, 1
    %s16 = ssub.s32 %s10, 2
    %s23 = sadd.s32 1, %s18
    %p24 = scmp.ge.s32.totalorder %s23, 1
    %s25 = scalar_select %p24, 0, %s23
    %s26 = sadd.s32 1, %s17
    %s27 = scalar_select %p24, %s26, %s17
    %p28 = scmp.ge.s32.totalorder %s27, 2
    %s29 = scalar_select %p28, 0, %s27
    %s30 = ssub.s32 %s17, %s29
    %s31 = ssub.s32 %s18, %s25
    %s32 = sor.u32 %s30, %s31
    %p33 = scmp.eq.s32.totalorder %s32, 0
    %s35 = sadd.s32 %s34, 1
    %s36 = scalar_select %p33, %s34, %s35
    %p39 = pneg %p33
    %p40 = scmp.eq.s32.totalorder %s10, 1
    %p41 = por %p39, %p40
    %p42 = scmp.ne.s32.totalorder %s34, %s37
    %p43 = scmp.eq.s32.totalorder %s10, 0
    %p44 = por %p42, %p43
    %p45 = scmp.ne.s32.totalorder %s34, %s37
    %p46 = scmp.eq.s32.totalorder %s15, 1
    %p47 = por %p45, %p46
    %p48 = scmp.ne.s32.totalorder %s37, %s38
    %p49 = scmp.eq.s32.totalorder %s15, 0
    %p50 = por %p48, %p49
    %p51 = scmp.ne.s32.totalorder %s37, %s38
    %p52 = scmp.eq.s32.totalorder %s16, 1
    %p53 = por %p51, %p52
    %p55 = scmp.ne.s32.totalorder %s38, %s54
    %p56 = scmp.eq.s32.totalorder %s16, 0
    %p57 = por %p55, %p56
    %s58 = ssub.s32 %s18, %s25
    %p59 = scmp.eq.s32.totalorder %s58, 0
    %s61 = sadd.s32 %s60, 1
    %s62 = scalar_select %p59, %s60, %s61
    %p65 = pneg %p59
    %p66 = scmp.eq.s32.totalorder %s10, 1
    %p67 = por %p65, %p66
    %p68 = scmp.ne.s32.totalorder %s60, %s63
    %p69 = scmp.eq.s32.totalorder %s10, 0
    %p70 = por %p68, %p69
    %p71 = scmp.ne.s32.totalorder %s60, %s63
    %p72 = scmp.eq.s32.totalorder %s15, 1
    %p73 = por %p71, %p72
    %p74 = scmp.ne.s32.totalorder %s63, %s64
    %p75 = scmp.eq.s32.totalorder %s15, 0
    %p76 = por %p74, %p75
    %p77 = scmp.ne.s32.totalorder %s63, %s64
    %p78 = scmp.eq.s32.totalorder %s16, 1
    %p79 = por %p77, %p78
    %p81 = scmp.ne.s32.totalorder %s64, %s80
    %p82 = scmp.eq.s32.totalorder %s16, 0
    %p83 = por %p81, %p82
    %s85 = sadd.s32 %s84, 1
    %p88 = scmp.eq.s32.totalorder %s10, 1
    %p89 = scmp.ne.s32.totalorder %s84, %s86
    %p90 = scmp.eq.s32.totalorder %s10, 0
    %p91 = por %p89, %p90
    %p92 = scmp.ne.s32.totalorder %s84, %s86
    %p93 = scmp.eq.s32.totalorder %s15, 1
    %p94 = por %p92, %p93
    %p95 = scmp.ne.s32.totalorder %s86, %s87
    %p96 = scmp.eq.s32.totalorder %s15, 0
    %p97 = por %p95, %p96
    %p98 = scmp.ne.s32.totalorder %s86, %s87
    %p99 = scmp.eq.s32.totalorder %s16, 1
    %p100 = por %p98, %p99
    %p102 = scmp.ne.s32.totalorder %s87, %s101
    %p103 = scmp.eq.s32.totalorder %s16, 0
    %p104 = por %p102, %p103
    %s106 = sadd.s32 %s105, 1
    %p109 = scmp.eq.s32.totalorder %s10, 1
    %p110 = scmp.ne.s32.totalorder %s105, %s107
    %p111 = scmp.eq.s32.totalorder %s10, 0
    %p112 = por %p110, %p111
    %p113 = scmp.ne.s32.totalorder %s105, %s107
    %p114 = scmp.eq.s32.totalorder %s15, 1
    %p115 = por %p113, %p114
    %p116 = scmp.ne.s32.totalorder %s107, %s108
    %p117 = scmp.eq.s32.totalorder %s15, 0
    %p118 = por %p116, %p117
    %p119 = scmp.ne.s32.totalorder %s107, %s108
    %p120 = scmp.eq.s32.totalorder %s16, 1
    %p121 = por %p119, %p120
    %p123 = scmp.ne.s32.totalorder %s108, %s122
    %p124 = scmp.eq.s32.totalorder %s16, 0
    %p125 = por %p123, %p124
    %s126 = ssub.s32 %s17, %s29
    %s127 = ssub.s32 %s18, %s25
    %s128 = sor.u32 %s126, %s127
    %p129 = scmp.eq.s32.totalorder %s128, 0
    %s131 = sadd.s32 %s130, 1
    %s132 = scalar_select %p129, %s130, %s131
    %p135 = pneg %p129
    %p136 = scmp.eq.s32.totalorder %s10, 1
    %p137 = por %p135, %p136
    %p138 = scmp.ne.s32.totalorder %s130, %s133
    %p139 = scmp.eq.s32.totalorder %s10, 0
    %p140 = por %p138, %p139
    %p141 = scmp.ne.s32.totalorder %s130, %s133
    %p142 = scmp.eq.s32.totalorder %s15, 1
    %p143 = por %p141, %p142
    %p144 = scmp.ne.s32.totalorder %s133, %s134
    %p145 = scmp.eq.s32.totalorder %s15, 0
    %p146 = por %p144, %p145
    %p147 = scmp.ne.s32.totalorder %s133, %s134
    %p148 = scmp.eq.s32.totalorder %s16, 1
    %p149 = por %p147, %p148
    %p151 = scmp.ne.s32.totalorder %s134, %s150
    %p152 = scmp.eq.s32.totalorder %s16, 0
    %p153 = por %p151, %p152
    %p154 = scmp.le.s32.totalorder 1, %s10
    %p155 = scmp.lt.s32.totalorder %s10, 3
    %p156 = pnand %p154, %p155
    %p157 = pneg %p156
    // Predicated region
    $region9: #{_lambda_.1} parent=5 // pred_check
      _
    $region10: #{_lambda_.1} parent=5 // pred_check_branch
      %159 = sbr.rel (%p156) target = $region12
    $region11: #{_lambda_.1} parent=5 // pred_region
      %s160 = ssub.s32 %s10, 1
      // Predicated region
      $region13: #{_lambda_.1} parent=11 // pred_check
        %p161 = pneg %p76
      $region14: #{_lambda_.1} parent=11 // pred_check_branch
        %163 = sbr.rel (%p161) target = $region16
      $region15: #{_lambda_.1} parent=11 // pred_region
        %s164 = smul.u32 8, %s20
        %p165 = scmp.lt.s32.totalorder %s164, 7
        %s166 = scalar_select %p165, %s164, 7
        %s167 = scalar_lea.vmem %s1, %s166
        %s168 = smul.u32 8, %s20
      $region16: #{_lambda_.1} parent=11 // pred_fallthru
        _
      // Predicated region
      $region17: #{_lambda_.1} parent=11 // pred_check
        %p169 = pneg %p97
      $region18: #{_lambda_.1} parent=11 // pred_check_branch
        %171 = sbr.rel (%p169) target = $region20
      $region19: #{_lambda_.1} parent=11 // pred_region
        _
      $region20: #{_lambda_.1} parent=11 // pred_fallthru
        _
      // Predicated region
      $region21: #{_lambda_.1} parent=11 // pred_check
        %p172 = pneg %p118
      $region22: #{_lambda_.1} parent=11 // pred_check_branch
        %174 = sbr.rel (%p172) target = $region24
      $region23: #{_lambda_.1} parent=11 // pred_region
        _
      $region24: #{_lambda_.1} parent=11 // pred_fallthru
        _
    $region12: #{_lambda_.1} parent=5 // pred_fallthru
      _
    %p175 = scmp.lt.s32.totalorder %s10, 2
    // Predicated region
    $region25: #{_lambda_.1} parent=5 // pred_check
      %p176 = pneg %p175
    $region26: #{_lambda_.1} parent=5 // pred_check_branch
      %178 = sbr.rel (%p176) target = $region28
    $region27: #{_lambda_.1} parent=5 // pred_region
      // Predicated region
      $region29: #{_lambda_.1} parent=27 // pred_check
        %p179 = pneg %p44
      $region30: #{_lambda_.1} parent=27 // pred_check_branch
        %181 = sbr.rel (%p179) target = $region32
      $region31: #{_lambda_.1} parent=27 // pred_region
        %s182 = smul.u32 8, %s18
        %p183 = scmp.lt.s32.totalorder %s17, 1
        %s184 = scalar_select %p183, %s17, 1
        %p185 = scmp.lt.s32.totalorder %s182, 7
        %s186 = scalar_select %p185, %s182, 7
        %s187 = smul.addr %s184, 8
        %s188 = sadd.s32 %s186, %s187
        %s189 = smul.addr %s188, 4
        %s190 = scalar_lea.vmem %s0, %s189
        %s191 = smul.u32 8, %s18
      $region32: #{_lambda_.1} parent=27 // pred_fallthru
        _
    $region28: #{_lambda_.1} parent=5 // pred_fallthru
      _
    %p192 = scmp.le.s32.totalorder 1, %s10
    %p193 = scmp.lt.s32.totalorder %s10, 3
    %p194 = pnand %p192, %p193
    %p195 = pneg %p194
    // Predicated region
    $region33: #{_lambda_.1} parent=5 // pred_check
      _
    $region34: #{_lambda_.1} parent=5 // pred_check_branch
      %197 = sbr.rel (%p194) target = $region36
    $region35: #{_lambda_.1} parent=5 // pred_region
      %s198 = ssub.s32 %s10, 1
      %s199 = smul.u32 8, %s20
      %p200 = scmp.lt.s32.totalorder %s19, 1
      %s201 = scalar_select %p200, %s19, 1
      %p202 = scmp.lt.s32.totalorder %s199, 7
      %s203 = scalar_select %p202, %s199, 7
      %s204 = smul.addr %s201, 8
      %s205 = sadd.s32 %s203, %s204
      %s206 = smul.addr %s205, 4
      %s207 = scalar_lea.vmem %s0, %s206
      %p208 = pneg %p50
      %p209 = pneg %p47
      %s210 = smul.u32 8, %s20
      %p211 = scmp.lt.s32.totalorder %s210, 7
      %s212 = scalar_select %p211, %s210, 7
      %s213 = scalar_lea.vmem %s1, %s212
      %p214 = pneg %p76
      %p215 = pneg %p73
      %p216 = pneg %p97
      %p217 = pneg %p94
      %p218 = pneg %p118
      %p219 = pneg %p115
      %p220 = pneg %p146
      %p221 = pneg %p143
      %s222 = smul.u32 8, %s20
      %p223 = scmp.lt.s32.totalorder %s19, 1
      %s224 = scalar_select %p223, %s19, 1
      %p225 = scmp.lt.s32.totalorder %s222, 7
      %s226 = scalar_select %p225, %s222, 7
      %s227 = smul.addr %s224, 8
      %s228 = sadd.s32 %s226, %s227
      %s229 = smul.addr %s228, 8
      %s230 = scalar_lea.vmem %s4, %s229
      %s231 = smul.u32 8, %s20
      %p232 = scmp.lt.s32.totalorder %s19, 1
      %s233 = scalar_select %p232, %s19, 1
      %p234 = scmp.lt.s32.totalorder %s231, 7
      %s235 = scalar_select %p234, %s231, 7
      %s236 = smul.addr %s233, 8
      %s237 = sadd.s32 %s235, %s236
      %s238 = smul.addr %s237, 4
      %s239 = scalar_lea.vmem %s0, %s238
      %s240 = smul.u32 8, %s20
      %s241 = smul.u32 8, %s20
      %p242 = scmp.lt.s32.totalorder %s241, 7
      %s243 = scalar_select %p242, %s241, 7
      %s244 = scalar_lea.vmem %s1, %s243
      %s245 = smul.u32 8, %s20
      %s246 = smul.u32 8, %s20
      %p247 = scmp.lt.s32.totalorder %s19, 1
      %s248 = scalar_select %p247, %s19, 1
      %p249 = scmp.lt.s32.totalorder %s246, 7
      %s250 = scalar_select %p249, %s246, 7
      %s251 = smul.addr %s248, 8
      %s252 = sadd.s32 %s250, %s251
      %s253 = smul.addr %s252, 8
      %s254 = scalar_lea.vmem %s4, %s253
      %s255 = smul.u32 8, %s20
      %v256 = vld [vmem:[%s239] sm:$0xff]
      %v257 = vld [vmem:[%s239 + $0x8] sm:$0xff]
      %v258 = vld [vmem:[%s239 + $0x10] sm:$0xff]
      %v259 = vld [vmem:[%s239 + $0x18] sm:$0xff]
      %v260 = vld [vmem:[%s2] sm:$0xff]
      %v261 = vld [vmem:[%s2 + $0x8] sm:$0xff]
      %v262 = vld [vmem:[%s2 + $0x10] sm:$0xff]
      %v263 = vld [vmem:[%s2 + $0x18] sm:$0xff]
      %268 = vst [vmem:[#allocation1] ss:$2 sm:$0xff] %v256
      %s269 = scalar_lea.vmem [#allocation1], 16
      %270 = vst [vmem:[%s269] ss:$2 sm:$0xff] %v257
      %s271 = scalar_lea.vmem [#allocation1], 32
      %272 = vst [vmem:[%s271] ss:$2 sm:$0xff] %v258
      %s273 = scalar_lea.vmem [#allocation1], 48
      %274 = vst [vmem:[%s273] ss:$2 sm:$0xff] %v259
      %v275 = vld.sshfl [vmem:[#allocation1] sm:$0xff pattern:$0x75316420]
      %v276 = vld.sshfl [vmem:[#allocation1 + $0x8] sm:$0xff pattern:$0x75316420]
      %v277 = vld.sshfl [vmem:[#allocation1 + $0x10] sm:$0xff pattern:$0x75316420]
      %v278 = vld.sshfl [vmem:[#allocation1 + $0x18] sm:$0xff pattern:$0x75316420]
      %v279 = vld.sshfl [vmem:[#allocation1 + $0x20] sm:$0xff pattern:$0x75316420]
      %v280 = vld.sshfl [vmem:[#allocation1 + $0x28] sm:$0xff pattern:$0x75316420]
      %v281 = vld.sshfl [vmem:[#allocation1 + $0x30] sm:$0xff pattern:$0x75316420]
      %v282 = vld.sshfl [vmem:[#allocation1 + $0x38] sm:$0xff pattern:$0x75316420]
      %vm283 = vcmask 31744
      %v285 = vsel %vm283, %v260, 0
      %v288 = vsel %vm283, %v261, 0
      %v291 = vsel %vm283, %v262, 0
      %v294 = vsel %vm283, %v263, 0
      %vm296 = vcmask 1043456
      %v297 = vsel %vm296, %v275, 0
      %v299 = vsel %vm296, %v276, 0
      %v301 = vsel %vm296, %v277, 0
      %v303 = vsel %vm296, %v278, 0
      %v305 = vsel %vm296, %v279, 0
      %v307 = vsel %vm296, %v280, 0
      %v309 = vsel %vm296, %v281, 0
      %v311 = vsel %vm296, %v282, 0
      %313 = vmatpush.msra.mxu0 0.0
      %314 = vmatpush.msra.mxu0 0.0
      %315 = vmatpush.msra.mxu0 0.0
      %316 = vmatpush.msra.mxu0 0.0
      %317 = vmatpush.msra.mxu0 0.0
      %318 = vmatpush.msra.mxu0 0.0
      %319 = vmatpush.msra.mxu0 0.0
      %320 = vmatpush.msra.mxu0 0.0
      %321 = vmatpush.msra.mxu0 0.0
      %322 = vmatpush.msra.mxu0 0.0
      %323 = vmatpush.msra.mxu0 0.0
      %324 = vmatpush.msra.mxu0 0.0
      %325 = vmatpush.msra.mxu0 0.0
      %326 = vmatpush.msra.mxu0 0.0
      %327 = vmatpush.msra.mxu0 0.0
      %328 = vmatpush.msra.mxu0 %v297
      %329 = vmatmul.f32.gmra.mxu0 %v285
      %v330 = vpop.f32.mrf.mxu0
      %v331 = vadd.f32 0.0, %v330
      %332 = vmatmul.f32.gmra.mxu0 %v288
      %v333 = vpop.f32.mrf.mxu0
      %v334 = vadd.f32 0.0, %v333
      %335 = vmatmul.f32.gmra.mxu0 %v291
      %v336 = vpop.f32.mrf.mxu0
      %v337 = vadd.f32 0.0, %v336
      %338 = vmatmul.f32.gmra.mxu0 %v294
      %v339 = vpop.f32.mrf.mxu0
      %v340 = vadd.f32 0.0, %v339
      %341 = vdwg.mxu0
      %342 = vmatpush.msra.mxu0 0.0
      %343 = vmatpush.msra.mxu0 0.0
      %344 = vmatpush.msra.mxu0 0.0
      %345 = vmatpush.msra.mxu0 0.0
      %346 = vmatpush.msra.mxu0 0.0
      %347 = vmatpush.msra.mxu0 0.0
      %348 = vmatpush.msra.mxu0 0.0
      %349 = vmatpush.msra.mxu0 0.0
      %350 = vmatpush.msra.mxu0 0.0
      %351 = vmatpush.msra.mxu0 0.0
      %352 = vmatpush.msra.mxu0 0.0
      %353 = vmatpush.msra.mxu0 0.0
      %354 = vmatpush.msra.mxu0 0.0
      %355 = vmatpush.msra.mxu0 0.0
      %356 = vmatpush.msra.mxu0 0.0
      %357 = vmatpush.msra.mxu0 %v299
      %358 = vmatmul.f32.gmra.mxu0 %v285
      %v359 = vpop.f32.mrf.mxu0
      %v360 = vadd.f32 0.0, %v359
      %361 = vmatmul.f32.gmra.mxu0 %v288
      %v362 = vpop.f32.mrf.mxu0
      %v363 = vadd.f32 0.0, %v362
      %364 = vmatmul.f32.gmra.mxu0 %v291
      %v365 = vpop.f32.mrf.mxu0
      %v366 = vadd.f32 0.0, %v365
      %367 = vmatmul.f32.gmra.mxu0 %v294
      %v368 = vpop.f32.mrf.mxu0
      %v369 = vadd.f32 0.0, %v368
      %370 = vdwg.mxu0
      %371 = vmatpush.msra.mxu0 0.0
      %372 = vmatpush.msra.mxu0 0.0
      %373 = vmatpush.msra.mxu0 0.0
      %374 = vmatpush.msra.mxu0 0.0
      %375 = vmatpush.msra.mxu0 0.0
      %376 = vmatpush.msra.mxu0 0.0
      %377 = vmatpush.msra.mxu0 0.0
      %378 = vmatpush.msra.mxu0 0.0
      %379 = vmatpush.msra.mxu0 0.0
      %380 = vmatpush.msra.mxu0 0.0
      %381 = vmatpush.msra.mxu0 0.0
      %382 = vmatpush.msra.mxu0 0.0
      %383 = vmatpush.msra.mxu0 0.0
      %384 = vmatpush.msra.mxu0 0.0
      %385 = vmatpush.msra.mxu0 0.0
      %386 = vmatpush.msra.mxu0 %v301
      %387 = vmatmul.f32.gmra.mxu0 %v285
      %v388 = vpop.f32.mrf.mxu0
      %v389 = vadd.f32 0.0, %v388
      %390 = vmatmul.f32.gmra.mxu0 %v288
      %v391 = vpop.f32.mrf.mxu0
      %v392 = vadd.f32 0.0, %v391
      %393 = vmatmul.f32.gmra.mxu0 %v291
      %v394 = vpop.f32.mrf.mxu0
      %v395 = vadd.f32 0.0, %v394
      %396 = vmatmul.f32.gmra.mxu0 %v294
      %v397 = vpop.f32.mrf.mxu0
      %v398 = vadd.f32 0.0, %v397
      %399 = vdwg.mxu0
      %400 = vmatpush.msra.mxu0 0.0
      %401 = vmatpush.msra.mxu0 0.0
      %402 = vmatpush.msra.mxu0 0.0
      %403 = vmatpush.msra.mxu0 0.0
      %404 = vmatpush.msra.mxu0 0.0
      %405 = vmatpush.msra.mxu0 0.0
      %406 = vmatpush.msra.mxu0 0.0
      %407 = vmatpush.msra.mxu0 0.0
      %408 = vmatpush.msra.mxu0 0.0
      %409 = vmatpush.msra.mxu0 0.0
      %410 = vmatpush.msra.mxu0 0.0
      %411 = vmatpush.msra.mxu0 0.0
      %412 = vmatpush.msra.mxu0 0.0
      %413 = vmatpush.msra.mxu0 0.0
      %414 = vmatpush.msra.mxu0 0.0
      %415 = vmatpush.msra.mxu0 %v303
      %416 = vmatmul.f32.gmra.mxu0 %v285
      %v417 = vpop.f32.mrf.mxu0
      %v418 = vadd.f32 0.0, %v417
      %419 = vmatmul.f32.gmra.mxu0 %v288
      %v420 = vpop.f32.mrf.mxu0
      %v421 = vadd.f32 0.0, %v420
      %422 = vmatmul.f32.gmra.mxu0 %v291
      %v423 = vpop.f32.mrf.mxu0
      %v424 = vadd.f32 0.0, %v423
      %425 = vmatmul.f32.gmra.mxu0 %v294
      %v426 = vpop.f32.mrf.mxu0
      %v427 = vadd.f32 0.0, %v426
      %428 = vdwg.mxu0
      %429 = vmatpush.msra.mxu0 0.0
      %430 = vmatpush.msra.mxu0 0.0
      %431 = vmatpush.msra.mxu0 0.0
      %432 = vmatpush.msra.mxu0 0.0
      %433 = vmatpush.msra.mxu0 0.0
      %434 = vmatpush.msra.mxu0 0.0
      %435 = vmatpush.msra.mxu0 0.0
      %436 = vmatpush.msra.mxu0 0.0
      %437 = vmatpush.msra.mxu0 0.0
      %438 = vmatpush.msra.mxu0 0.0
      %439 = vmatpush.msra.mxu0 0.0
      %440 = vmatpush.msra.mxu0 0.0
      %441 = vmatpush.msra.mxu0 0.0
      %442 = vmatpush.msra.mxu0 0.0
      %443 = vmatpush.msra.mxu0 0.0
      %444 = vmatpush.msra.mxu0 %v305
      %445 = vmatmul.f32.gmra.mxu0 %v285
      %v446 = vpop.f32.mrf.mxu0
      %v447 = vadd.f32 0.0, %v446
      %448 = vmatmul.f32.gmra.mxu0 %v288
      %v449 = vpop.f32.mrf.mxu0
      %v450 = vadd.f32 0.0, %v449
      %451 = vmatmul.f32.gmra.mxu0 %v291
      %v452 = vpop.f32.mrf.mxu0
      %v453 = vadd.f32 0.0, %v452
      %454 = vmatmul.f32.gmra.mxu0 %v294
      %v455 = vpop.f32.mrf.mxu0
      %v456 = vadd.f32 0.0, %v455
      %457 = vdwg.mxu0
      %458 = vmatpush.msra.mxu0 0.0
      %459 = vmatpush.msra.mxu0 0.0
      %460 = vmatpush.msra.mxu0 0.0
      %461 = vmatpush.msra.mxu0 0.0
      %462 = vmatpush.msra.mxu0 0.0
      %463 = vmatpush.msra.mxu0 0.0
      %464 = vmatpush.msra.mxu0 0.0
      %465 = vmatpush.msra.mxu0 0.0
      %466 = vmatpush.msra.mxu0 0.0
      %467 = vmatpush.msra.mxu0 0.0
      %468 = vmatpush.msra.mxu0 0.0
      %469 = vmatpush.msra.mxu0 0.0
      %470 = vmatpush.msra.mxu0 0.0
      %471 = vmatpush.msra.mxu0 0.0
      %472 = vmatpush.msra.mxu0 0.0
      %473 = vmatpush.msra.mxu0 %v307
      %474 = vmatmul.f32.gmra.mxu0 %v285
      %v475 = vpop.f32.mrf.mxu0
      %v476 = vadd.f32 0.0, %v475
      %477 = vmatmul.f32.gmra.mxu0 %v288
      %v478 = vpop.f32.mrf.mxu0
      %v479 = vadd.f32 0.0, %v478
      %480 = vmatmul.f32.gmra.mxu0 %v291
      %v481 = vpop.f32.mrf.mxu0
      %v482 = vadd.f32 0.0, %v481
      %483 = vmatmul.f32.gmra.mxu0 %v294
      %v484 = vpop.f32.mrf.mxu0
      %v485 = vadd.f32 0.0, %v484
      %486 = vdwg.mxu0
      %487 = vmatpush.msra.mxu0 0.0
      %488 = vmatpush.msra.mxu0 0.0
      %489 = vmatpush.msra.mxu0 0.0
      %490 = vmatpush.msra.mxu0 0.0
      %491 = vmatpush.msra.mxu0 0.0
      %492 = vmatpush.msra.mxu0 0.0
      %493 = vmatpush.msra.mxu0 0.0
      %494 = vmatpush.msra.mxu0 0.0
      %495 = vmatpush.msra.mxu0 0.0
      %496 = vmatpush.msra.mxu0 0.0
      %497 = vmatpush.msra.mxu0 0.0
      %498 = vmatpush.msra.mxu0 0.0
      %499 = vmatpush.msra.mxu0 0.0
      %500 = vmatpush.msra.mxu0 0.0
      %501 = vmatpush.msra.mxu0 0.0
      %502 = vmatpush.msra.mxu0 %v309
      %503 = vmatmul.f32.gmra.mxu0 %v285
      %v504 = vpop.f32.mrf.mxu0
      %v505 = vadd.f32 0.0, %v504
      %506 = vmatmul.f32.gmra.mxu0 %v288
      %v507 = vpop.f32.mrf.mxu0
      %v508 = vadd.f32 0.0, %v507
      %509 = vmatmul.f32.gmra.mxu0 %v291
      %v510 = vpop.f32.mrf.mxu0
      %v511 = vadd.f32 0.0, %v510
      %512 = vmatmul.f32.gmra.mxu0 %v294
      %v513 = vpop.f32.mrf.mxu0
      %v514 = vadd.f32 0.0, %v513
      %515 = vdwg.mxu0
      %516 = vmatpush.msra.mxu0 0.0
      %517 = vmatpush.msra.mxu0 0.0
      %518 = vmatpush.msra.mxu0 0.0
      %519 = vmatpush.msra.mxu0 0.0
      %520 = vmatpush.msra.mxu0 0.0
      %521 = vmatpush.msra.mxu0 0.0
      %522 = vmatpush.msra.mxu0 0.0
      %523 = vmatpush.msra.mxu0 0.0
      %524 = vmatpush.msra.mxu0 0.0
      %525 = vmatpush.msra.mxu0 0.0
      %526 = vmatpush.msra.mxu0 0.0
      %527 = vmatpush.msra.mxu0 0.0
      %528 = vmatpush.msra.mxu0 0.0
      %529 = vmatpush.msra.mxu0 0.0
      %530 = vmatpush.msra.mxu0 0.0
      %531 = vmatpush.msra.mxu0 %v311
      %532 = vmatmul.f32.gmra.mxu0 %v285
      %v533 = vpop.f32.mrf.mxu0
      %v534 = vadd.f32 0.0, %v533
      %535 = vmatmul.f32.gmra.mxu0 %v288
      %v536 = vpop.f32.mrf.mxu0
      %v537 = vadd.f32 0.0, %v536
      %538 = vmatmul.f32.gmra.mxu0 %v291
      %v539 = vpop.f32.mrf.mxu0
      %v540 = vadd.f32 0.0, %v539
      %541 = vmatmul.f32.gmra.mxu0 %v294
      %v542 = vpop.f32.mrf.mxu0
      %v543 = vadd.f32 0.0, %v542
      %544 = vdwg.mxu0
      %v545 = vld [vmem:[%s244] sm:$0xff]
      %vm546 = vcmp.lt.s32.totalorder %v545, 2
      %vm547 = vcmp.eq.s32.totalorder %v545, 0
      %v548 = vsel %vm547, 1, 0
      %v549 = vperm.slane %v548, 0
      %v550 = vperm.slane %v548, 1
      %v551 = vperm.slane %v548, 2
      %v552 = vperm.slane %v548, 3
      %v553 = vperm.slane %v548, 4
      %v554 = vperm.slane %v548, 5
      %v555 = vperm.slane %v548, 6
      %v556 = vperm.slane %v548, 7
      %vm557 = vcmp.eq.s32.totalorder %v549, 1
      %vm558 = vcmp.eq.s32.totalorder %v550, 1
      %vm559 = vcmp.eq.s32.totalorder %v551, 1
      %vm560 = vcmp.eq.s32.totalorder %v552, 1
      %vm561 = vcmp.eq.s32.totalorder %v553, 1
      %vm562 = vcmp.eq.s32.totalorder %v554, 1
      %vm563 = vcmp.eq.s32.totalorder %v555, 1
      %vm564 = vcmp.eq.s32.totalorder %v556, 1
      %v565 = vsel %vm557, %v331, %v334
      %v566 = vsel %vm558, %v360, %v363
      %v567 = vsel %vm559, %v389, %v392
      %v568 = vsel %vm560, %v418, %v421
      %v569 = vsel %vm561, %v447, %v450
      %v570 = vsel %vm562, %v476, %v479
      %v571 = vsel %vm563, %v505, %v508
      %v572 = vsel %vm564, %v534, %v537
      %vm573 = vcmp.eq.s32.totalorder %v545, 2
      %v574 = vsel %vm573, 1, 0
      %v575 = vperm.slane %v574, 0
      %v576 = vperm.slane %v574, 1
      %v577 = vperm.slane %v574, 2
      %v578 = vperm.slane %v574, 3
      %v579 = vperm.slane %v574, 4
      %v580 = vperm.slane %v574, 5
      %v581 = vperm.slane %v574, 6
      %v582 = vperm.slane %v574, 7
      %vm583 = vcmp.eq.s32.totalorder %v575, 1
      %vm584 = vcmp.eq.s32.totalorder %v576, 1
      %vm585 = vcmp.eq.s32.totalorder %v577, 1
      %vm586 = vcmp.eq.s32.totalorder %v578, 1
      %vm587 = vcmp.eq.s32.totalorder %v579, 1
      %vm588 = vcmp.eq.s32.totalorder %v580, 1
      %vm589 = vcmp.eq.s32.totalorder %v581, 1
      %vm590 = vcmp.eq.s32.totalorder %v582, 1
      %v591 = vsel %vm583, %v337, %v340
      %v592 = vsel %vm584, %v366, %v369
      %v593 = vsel %vm585, %v395, %v398
      %v594 = vsel %vm586, %v424, %v427
      %v595 = vsel %vm587, %v453, %v456
      %v596 = vsel %vm588, %v482, %v485
      %v597 = vsel %vm589, %v511, %v514
      %v598 = vsel %vm590, %v540, %v543
      %v599 = vsel %vm546, 1, 0
      %v600 = vperm.slane %v599, 0
      %v601 = vperm.slane %v599, 1
      %v602 = vperm.slane %v599, 2
      %v603 = vperm.slane %v599, 3
      %v604 = vperm.slane %v599, 4
      %v605 = vperm.slane %v599, 5
      %v606 = vperm.slane %v599, 6
      %v607 = vperm.slane %v599, 7
      %vm608 = vcmp.eq.s32.totalorder %v600, 1
      %vm609 = vcmp.eq.s32.totalorder %v601, 1
      %vm610 = vcmp.eq.s32.totalorder %v602, 1
      %vm611 = vcmp.eq.s32.totalorder %v603, 1
      %vm612 = vcmp.eq.s32.totalorder %v604, 1
      %vm613 = vcmp.eq.s32.totalorder %v605, 1
      %vm614 = vcmp.eq.s32.totalorder %v606, 1
      %vm615 = vcmp.eq.s32.totalorder %v607, 1
      %v616 = vsel %vm608, %v565, %v591
      %v617 = vsel %vm609, %v566, %v592
      %v618 = vsel %vm610, %v567, %v593
      %v619 = vsel %vm611, %v568, %v594
      %v620 = vsel %vm612, %v569, %v595
      %v621 = vsel %vm613, %v570, %v596
      %v622 = vsel %vm614, %v571, %v597
      %v623 = vsel %vm615, %v572, %v598
      %v624 = vld [vmem:[%s3] sm:$0xff]
      %626 = vset.pattern.permute.xlu0 0
      %627 = vperm.xlu0 %626, %v624
      %v628 = vpop.permute.xlu0 %627
      %v630 = vadd.f32 %v616, %v628
      %v631 = vadd.f32 %v617, %v628
      %v632 = vadd.f32 %v618, %v628
      %v633 = vadd.f32 %v619, %v628
      %v634 = vadd.f32 %v620, %v628
      %v635 = vadd.f32 %v621, %v628
      %v636 = vadd.f32 %v622, %v628
      %v637 = vadd.f32 %v623, %v628
      %v638 = vmul.f32 %v630, 0.5
      %v639 = vmul.f32 %v631, 0.5
      %v640 = vmul.f32 %v632, 0.5
      %v641 = vmul.f32 %v633, 0.5
      %v642 = vmul.f32 %v634, 0.5
      %v643 = vmul.f32 %v635, 0.5
      %v644 = vmul.f32 %v636, 0.5
      %v645 = vmul.f32 %v637, 0.5
      %v646 = vtanh.pop %v638
      %v647 = vtanh.pop %v639
      %v648 = vtanh.pop %v640
      %v649 = vtanh.pop %v641
      %v650 = vtanh.pop %v642
      %v651 = vtanh.pop %v643
      %v652 = vtanh.pop %v644
      %v653 = vtanh.pop %v645
      %v654 = vadd.f32 %v646, 1.0
      %v655 = vadd.f32 %v647, 1.0
      %v656 = vadd.f32 %v648, 1.0
      %v657 = vadd.f32 %v649, 1.0
      %v658 = vadd.f32 %v650, 1.0
      %v659 = vadd.f32 %v651, 1.0
      %v660 = vadd.f32 %v652, 1.0
      %v661 = vadd.f32 %v653, 1.0
      %v662 = vmul.f32 %v638, %v654
      %v663 = vmul.f32 %v639, %v655
      %v664 = vmul.f32 %v640, %v656
      %v665 = vmul.f32 %v641, %v657
      %v666 = vmul.f32 %v642, %v658
      %v667 = vmul.f32 %v643, %v659
      %v668 = vmul.f32 %v644, %v660
      %v669 = vmul.f32 %v645, %v661
      %670 = vst [vmem:[%s254] sm:$0xff] %v662
      %671 = vst [vmem:[%s254 + $0x8] sm:$0xff] %v663
      %672 = vst [vmem:[%s254 + $0x10] sm:$0xff] %v664
      %673 = vst [vmem:[%s254 + $0x18] sm:$0xff] %v665
      %674 = vst [vmem:[%s254 + $0x20] sm:$0xff] %v666
      %675 = vst [vmem:[%s254 + $0x28] sm:$0xff] %v667
      %676 = vst [vmem:[%s254 + $0x30] sm:$0xff] %v668
      %677 = vst [vmem:[%s254 + $0x38] sm:$0xff] %v669
      %s678 = smul.u32 8, %s20
      %p679 = scmp.lt.s32.totalorder %s19, 1
      %s680 = scalar_select %p679, %s19, 1
      %p681 = scmp.lt.s32.totalorder %s678, 7
      %s682 = scalar_select %p681, %s678, 7
      %s683 = smul.addr %s680, 8
      %s684 = sadd.s32 %s682, %s683
      %s685 = smul.addr %s684, 8
      %s686 = scalar_lea.vmem %s4, %s685
      // Predicated region
      $region37: #{_lambda_.1} parent=35 // pred_check
        %p687 = pneg %p143
      $region38: #{_lambda_.1} parent=35 // pred_check_branch
        %689 = sbr.rel (%p687) target = $region40
      $region39: #{_lambda_.1} parent=35 // pred_region
        %s690 = smul.u32 8, %s20
      $region40: #{_lambda_.1} parent=35 // pred_fallthru
        _
    $region36: #{_lambda_.1} parent=5 // pred_fallthru
      _
    %p691 = scmp.le.s32.totalorder 2, %s10
    // Predicated region
    $region41: #{_lambda_.1} parent=5 // pred_check
      %p692 = pneg %p691
    $region42: #{_lambda_.1} parent=5 // pred_check_branch
      %694 = sbr.rel (%p692) target = $region44
    $region43: #{_lambda_.1} parent=5 // pred_region
      %s695 = ssub.s32 %s10, 2
      // Predicated region
      $region45: #{_lambda_.1} parent=43 // pred_check
        %p696 = pneg %p149
      $region46: #{_lambda_.1} parent=43 // pred_check_branch
        %698 = sbr.rel (%p696) target = $region48
      $region47: #{_lambda_.1} parent=43 // pred_region
        %s699 = smul.u32 8, %s22
        %p700 = scmp.lt.s32.totalorder %s21, 1
        %s701 = scalar_select %p700, %s21, 1
        %p702 = scmp.lt.s32.totalorder %s699, 7
        %s703 = scalar_select %p702, %s699, 7
        %s704 = smul.addr %s701, 8
        %s705 = sadd.s32 %s703, %s704
        %s706 = smul.addr %s705, 8
        %s707 = scalar_lea.vmem %s4, %s706
      $region48: #{_lambda_.1} parent=43 // pred_fallthru
        _
    $region44: #{_lambda_.1} parent=5 // pred_fallthru
      _
  $region6: #{_lambda_.1} parent=0 // loop_footer
    %s14 = sadd.s32 1, %s10
  $region7: #{_lambda_.1} parent=0 // loop_footer_branch
    %9 = sbr.rel target = $region3
  $region8: #{_lambda_.1} parent=0 // loop_exit
    _

</llo_original>
